<compile_context>
chip_gen: v7x
topology: tpu7x:2x2x1
jax: 0.10.0
libtpu: 0.0.40
codegen_flags: <defaults>
</compile_context>

<pallas_src>
import math

import jax
import jax.numpy as jnp
from jax.experimental import pallas as pl
from jax.experimental.pallas import tpu as pltpu


# ----------------------------- kernels -----------------------------

def _glu_kernel(a_ref, g_ref, o_ref):
    # a/g are the two halves of the split, delivered as separate VMEM blocks.
    a = a_ref[...].astype(jnp.float32)
    g = g_ref[...].astype(jnp.float32)
    o_ref[...] = (a * jax.nn.sigmoid(g)).astype(o_ref.dtype)


def _glu_lastdim_kernel(x_ref, o_ref):
    # Split along the lane axis inside the kernel (block spans the full lane extent).
    x = x_ref[...].astype(jnp.float32)
    s = x.shape[-1] // 2
    o_ref[...] = (x[:, :s] * jax.nn.sigmoid(x[:, s:])).astype(o_ref.dtype)


# ----------------------------- tiling helpers -----------------------------

_LANE_TILES = (512, 256, 128)                       # lane-dense candidates
_ROW_TILES = (1024, 512, 256, 128, 64, 32, 16, 8)   # sublane candidates
_TILE_BYTES_BUDGET = 2 * 1024 * 1024                # per-ref block budget


def _pick_tile(size, candidates):
    for c in candidates:
        if size % c == 0:
            return c
    return size  # full extent -> always a legal block shape


def _compiler_params(n_axes, block_bytes):
    vmem_limit = int(min(64 << 20, max(16 << 20, 8 * block_bytes)))
    return pltpu.CompilerParams(
        dimension_semantics=("parallel",) * n_axes,
        vmem_limit_bytes=vmem_limit,
    )


# ----------------------------- wrapper -----------------------------

def glu(x, dim):
    """GLU forward: split x in two along `dim`, return first * sigmoid(second)."""
    nd = x.ndim
    dim = dim % nd
    two_s = x.shape[dim]
    if two_s % 2 != 0:
        raise ValueError("GLU split dimension must be even")
    s = two_s // 2
    out_shape = x.shape[:dim] + (s,) + x.shape[dim + 1:]
    itemsize = jnp.dtype(x.dtype).itemsize

    if dim == nd - 1:
        # Split axis is the lane axis: keep the full lane extent per block (always a
        # legal block shape), split inside the kernel, tile over rows.
        m = math.prod(x.shape[:dim])
        x2 = x.reshape(m, two_s)
        budget_rows = max(8, _TILE_BYTES_BUDGET // max(1, two_s * itemsize))
        tm = _pick_tile(m, tuple(c for c in _ROW_TILES if c <= budget_rows))
        block_bytes = tm * two_s * itemsize
        out2 = pl.pallas_call(
            _glu_lastdim_kernel,
            out_shape=jax.ShapeDtypeStruct((m, s), x.dtype),
            grid=(m // tm,),
            in_specs=[pl.BlockSpec((tm, two_s), lambda i: (i, 0))],
            out_specs=pl.BlockSpec((tm, s), lambda i: (i, 0)),
            compiler_params=_compiler_params(1, block_bytes),
        )(x2)
        return out2.reshape(out_shape)

    # General case (e.g. conformer's GLU(dim=1) on (B, 2*C, N)): free reshape to
    # (outer, 2, S, inner); the two halves are read from the same HBM array via two
    # BlockSpecs whose index_map selects chunk 0 vs chunk 1 -> no XLA-side slicing,
    # no extra HBM round trip, purely elementwise kernel.
    outer = math.prod(x.shape[:dim])
    inner = math.prod(x.shape[dim + 1:])
    x4 = x.reshape(outer, 2, s, inner)

    tn = _pick_tile(inner, _LANE_TILES)  # lane-dense last dim
    budget_rows = max(8, _TILE_BYTES_BUDGET // max(1, tn * itemsize))
    tc = _pick_tile(s, tuple(c for c in _ROW_TILES if c <= budget_rows))
    grid = (outer, s // tc, inner // tn)
    block_bytes = tc * tn * itemsize

    out3 = pl.pallas_call(
        _glu_kernel,
        out_shape=jax.ShapeDtypeStruct((outer, s, inner), x.dtype),
        grid=grid,
        in_specs=[
            pl.BlockSpec((None, None, tc, tn), lambda b, ci, ni: (b, 0, ci, ni)),
            pl.BlockSpec((None, None, tc, tn), lambda b, ci, ni: (b, 1, ci, ni)),
        ],
        out_specs=pl.BlockSpec((None, tc, tn), lambda b, ci, ni: (b, ci, ni)),
        compiler_params=_compiler_params(3, block_bytes),
    )(x4, x4)
    return out3.reshape(out_shape)


# ----------------------------- demo / self-check -----------------------------

if __name__ == "__main__":
    key = jax.random.PRNGKey(0)
    k1, k2 = jax.random.split(key)

    # Conformer usage: pointwise Conv1d output (B, 2*inner_dim, N), GLU(dim=1).
    B, C, N = 2, 64, 256
    x1 = jax.random.normal(k1, (B, 2 * C, N), jnp.float32)
    y1 = glu(x1, dim=1)
    a1, g1 = jnp.split(x1, 2, axis=1)
    ref1 = a1 * jax.nn.sigmoid(g1)

    # Last-dim split path.
    x2 = jax.random.normal(k2, (2, 8, 64), jnp.float32)
    y2 = glu(x2, dim=-1)
    a2, g2 = jnp.split(x2, 2, axis=-1)
    ref2 = a2 * jax.nn.sigmoid(g2)

    jax.block_until_ready((y1, y2))
    assert y1.shape == (B, C, N) and y2.shape == (2, 8, 32)
    assert jnp.allclose(y1, ref1, atol=1e-6, rtol=1e-6)
    assert jnp.allclose(y2, ref2, atol=1e-6, rtol=1e-6)
    print("KERNEL_OK")
</pallas_src>

<mosaic_0001>
module attributes {stable_mosaic.version = 11 : i64} {
  func.func @_glu_kernel(%arg0: i32, %arg1: i32, %arg2: i32, %arg3: memref<1x1x64x256xf32, #tpu.memory_space<vmem>>, %arg4: memref<1x1x64x256xf32, #tpu.memory_space<vmem>>, %arg5: memref<1x64x256xf32, #tpu.memory_space<vmem>>) attributes {dimension_semantics = [#tpu.dimension_semantics<parallel>, #tpu.dimension_semantics<parallel>, #tpu.dimension_semantics<parallel>], iteration_bounds = array<i64: 2, 1, 1>, scalar_prefetch = 0 : i64, scratch_operands = 0 : i64, tpu.core_type = #tpu.core_type<tc>, window_params = [{transform_indices = @transform_0, window_bounds = array<i64: 1, 1, 64, 256>}, {transform_indices = @transform_1, window_bounds = array<i64: 1, 1, 64, 256>}, {transform_indices = @transform_2, window_bounds = array<i64: 1, 64, 256>}]} {
    %c0 = arith.constant 0 : index
    %c0_0 = arith.constant 0 : index
    %c0_1 = arith.constant 0 : index
    %c0_2 = arith.constant 0 : index
    %0 = vector.load %arg3[%c0, %c0_0, %c0_1, %c0_2] : memref<1x1x64x256xf32, #tpu.memory_space<vmem>>, vector<1x1x64x256xf32>
    %1 = vector.shape_cast %0 : vector<1x1x64x256xf32> to vector<64x256xf32>
    %c0_3 = arith.constant 0 : index
    %c0_4 = arith.constant 0 : index
    %c0_5 = arith.constant 0 : index
    %c0_6 = arith.constant 0 : index
    %2 = vector.load %arg4[%c0_3, %c0_4, %c0_5, %c0_6] : memref<1x1x64x256xf32, #tpu.memory_space<vmem>>, vector<1x1x64x256xf32>
    %3 = vector.shape_cast %2 : vector<1x1x64x256xf32> to vector<64x256xf32>
    %4 = arith.negf %3 : vector<64x256xf32>
    %5 = math.exp %4 : vector<64x256xf32>
    %cst = arith.constant 1.000000e+00 : f32
    %6 = vector.broadcast %cst : f32 to vector<64x256xf32>
    %7 = arith.addf %6, %5 : vector<64x256xf32>
    %8 = arith.divf %6, %7 : vector<64x256xf32>
    %9 = arith.mulf %1, %8 : vector<64x256xf32>
    %c0_7 = arith.constant 0 : index
    %c0_8 = arith.constant 0 : index
    %c0_9 = arith.constant 0 : index
    %10 = vector.load %arg5[%c0_7, %c0_8, %c0_9] : memref<1x64x256xf32, #tpu.memory_space<vmem>>, vector<1x64x256xf32>
    %11 = vector.shape_cast %10 : vector<1x64x256xf32> to vector<64x256xf32>
    %12 = vector.shape_cast %9 : vector<64x256xf32> to vector<1x64x256xf32>
    tpu.vector_store %arg5[%c0_7, %c0_8, %c0_9], %12 {strides = array<i32>} : memref<1x64x256xf32, #tpu.memory_space<vmem>>, vector<1x64x256xf32>,
    return
  }
  func.func @transform_0(%arg0: i32, %arg1: i32, %arg2: i32) -> (i32, i32, i32, i32) {
    %c0_i32 = arith.constant 0 : i32
    %c0_i32_0 = arith.constant 0 : i32
    return %arg0, %c0_i32, %arg1, %arg2 : i32, i32, i32, i32
  }
  func.func @transform_1(%arg0: i32, %arg1: i32, %arg2: i32) -> (i32, i32, i32, i32) {
    %c1_i32 = arith.constant 1 : i32
    %c0_i32 = arith.constant 0 : i32
    return %arg0, %c1_i32, %arg1, %arg2 : i32, i32, i32, i32
  }
  func.func @transform_2(%arg0: i32, %arg1: i32, %arg2: i32) -> (i32, i32, i32) {
    %c0_i32 = arith.constant 0 : i32
    return %arg0, %arg1, %arg2 : i32, i32, i32
  }
}

</mosaic_0001>

<llo_original>
// kernel: tpu_custom_call.1
$region0: #{tpu_custom_call.1}
  #allocation0 [shape = 'u32[]', space=smem, size = 0x4, offset = 0x4, fixed_abs, tag = 'smem constant byte address 0x4 - core index']
  #allocation1 [shape = 'u32[144,128]{1,0:T(1,128)}', space=vmem, size = 0x12000, scoped, tag = 'internal scratch']
  %s0 = inlined_call_operand.hbm [shape: f32[2,2,64,256], index: 0, kind: input, shape index: {}]
  %s1 = inlined_call_operand.hbm [shape: f32[2,2,64,256], index: 1, kind: input, shape index: {}]
  %s2 = inlined_call_operand.hbm [shape: f32[2,64,256], index: 2, kind: output, shape index: {}]
  %s3 = sld [smem:[#allocation0]]
  $region49: #{tpu_custom_call.1} parent=0
    _
  %s5 = ssub.s32 1, %s3
  %s6 = scalar_select 0, %s5, %s3
  $region1: #{tpu_custom_call.1} parent=0
    #allocation2 [shape = 'u8[131072]{0}', space=vmem, size = 0x20000, scoped, tag = 'input window, operand 0']
    #allocation3 [shape = 's32[2]{0}', space=sflag, size = 0x8, scoped, tag = 'scoped memory for tpu_custom_call.1']
    #allocation4 [shape = 's32[2]{0}', space=sflag, size = 0x8, scoped, tag = 'scoped memory for tpu_custom_call.1']
    #allocation5 [shape = 'u8[131072]{0}', space=vmem, size = 0x20000, scoped, tag = 'input window, operand 1']
    #allocation6 [shape = 's32[2]{0}', space=sflag, size = 0x8, scoped, tag = 'scoped memory for tpu_custom_call.1']
    #allocation7 [shape = 'u8[131072]{0}', space=vmem, size = 0x20000, scoped, tag = 'output window, operand 0']
    %7 = vsyncpa [#allocation3], 0
    %s8 = scalar_lea.sflag [#allocation3], 1
    %9 = vsyncpa %s8, 0
    %10 = vsyncpa [#allocation6], 0
    %s11 = scalar_lea.sflag [#allocation6], 1
    %12 = vsyncpa %s11, 0
    %13 = vsyncpa [#allocation4], 0
    %s14 = scalar_lea.sflag [#allocation4], 1
    %15 = vsyncpa %s14, 0
    loop: start=0, step=1, limit=4
    $region2: #{tpu_custom_call.1} parent=1 // loop_pre_header
      _
    $region3: #{tpu_custom_call.1} parent=1 // loop_header
      %s17 = sphi 0, %s21
      %p18 = scmp.ge.s32.totalorder %s17, 4
      %s24 = sphi 0, %s43
      %s25 = sphi 0, %s39
      %s26 = sphi 0, %s35
      %s27 = sphi 0, %s24
      %s28 = sphi 0, %s25
      %s29 = sphi 0, %s26
      %s30 = sphi 0, %s27
      %s31 = sphi 0, %s28
      %s32 = sphi 0, %s29
      %s50 = sphi 0, %s52
      %s53 = sphi 0, %s50
      %s54 = sphi 0, %s53
      %s70 = sphi 0, %s54
      %s80 = sphi 0, %s82
      %s83 = sphi 0, %s80
      %s84 = sphi 0, %s83
      %s100 = sphi 0, %s84
      %s110 = sphi 0, %s112
      %s113 = sphi 0, %s110
      %s114 = sphi 0, %s113
      %s130 = sphi 0, %s114
    $region4: #{tpu_custom_call.1} parent=1 // loop_header_branch
      %20 = sbr.rel (%p18) target = $region8
    $region5: #{tpu_custom_call.1} parent=1 // loop_body
      %s22 = ssub.s32 %s17, 1
      %s23 = ssub.s32 %s17, 2
      %s33 = sadd.s32 1, %s26
      %p34 = scmp.ge.s32.totalorder %s33, 1
      %s35 = scalar_select %p34, 0, %s33
      %s36 = sadd.s32 1, %s25
      %s37 = scalar_select %p34, %s36, %s25
      %p38 = scmp.ge.s32.totalorder %s37, 1
      %s39 = scalar_select %p38, 0, %s37
      %s40 = sadd.s32 1, %s24
      %s41 = scalar_select %p38, %s40, %s24
      %p42 = scmp.ge.s32.totalorder %s41, 2
      %s43 = scalar_select %p42, 0, %s41
      %s44 = ssub.s32 %s24, %s43
      %s45 = ssub.s32 %s25, %s39
      %s46 = sor.u32 %s44, %s45
      %s47 = ssub.s32 %s26, %s35
      %s48 = sor.u32 %s46, %s47
      %p49 = scmp.eq.s32.totalorder %s48, 0
      %s51 = sadd.s32 %s50, 1
      %s52 = scalar_select %p49, %s50, %s51
      %p55 = pneg %p49
      %p56 = scmp.eq.s32.totalorder %s17, 1
      %p57 = por %p55, %p56
      %p58 = scmp.ne.s32.totalorder %s50, %s53
      %p59 = scmp.eq.s32.totalorder %s17, 0
      %p60 = por %p58, %p59
      %p61 = scmp.ne.s32.totalorder %s50, %s53
      %p62 = scmp.eq.s32.totalorder %s22, 1
      %p63 = por %p61, %p62
      %p64 = scmp.ne.s32.totalorder %s53, %s54
      %p65 = scmp.eq.s32.totalorder %s22, 0
      %p66 = por %p64, %p65
      %p67 = scmp.ne.s32.totalorder %s53, %s54
      %p68 = scmp.eq.s32.totalorder %s23, 1
      %p69 = por %p67, %p68
      %p71 = scmp.ne.s32.totalorder %s54, %s70
      %p72 = scmp.eq.s32.totalorder %s23, 0
      %p73 = por %p71, %p72
      %s74 = ssub.s32 %s24, %s43
      %s75 = ssub.s32 %s25, %s39
      %s76 = sor.u32 %s74, %s75
      %s77 = ssub.s32 %s26, %s35
      %s78 = sor.u32 %s76, %s77
      %p79 = scmp.eq.s32.totalorder %s78, 0
      %s81 = sadd.s32 %s80, 1
      %s82 = scalar_select %p79, %s80, %s81
      %p85 = pneg %p79
      %p86 = scmp.eq.s32.totalorder %s17, 1
      %p87 = por %p85, %p86
      %p88 = scmp.ne.s32.totalorder %s80, %s83
      %p89 = scmp.eq.s32.totalorder %s17, 0
      %p90 = por %p88, %p89
      %p91 = scmp.ne.s32.totalorder %s80, %s83
      %p92 = scmp.eq.s32.totalorder %s22, 1
      %p93 = por %p91, %p92
      %p94 = scmp.ne.s32.totalorder %s83, %s84
      %p95 = scmp.eq.s32.totalorder %s22, 0
      %p96 = por %p94, %p95
      %p97 = scmp.ne.s32.totalorder %s83, %s84
      %p98 = scmp.eq.s32.totalorder %s23, 1
      %p99 = por %p97, %p98
      %p101 = scmp.ne.s32.totalorder %s84, %s100
      %p102 = scmp.eq.s32.totalorder %s23, 0
      %p103 = por %p101, %p102
      %s104 = ssub.s32 %s24, %s43
      %s105 = ssub.s32 %s25, %s39
      %s106 = sor.u32 %s104, %s105
      %s107 = ssub.s32 %s26, %s35
      %s108 = sor.u32 %s106, %s107
      %p109 = scmp.eq.s32.totalorder %s108, 0
      %s111 = sadd.s32 %s110, 1
      %s112 = scalar_select %p109, %s110, %s111
      %p115 = pneg %p109
      %p116 = scmp.eq.s32.totalorder %s17, 1
      %p117 = por %p115, %p116
      %p118 = scmp.ne.s32.totalorder %s110, %s113
      %p119 = scmp.eq.s32.totalorder %s17, 0
      %p120 = por %p118, %p119
      %p121 = scmp.ne.s32.totalorder %s110, %s113
      %p122 = scmp.eq.s32.totalorder %s22, 1
      %p123 = por %p121, %p122
      %p124 = scmp.ne.s32.totalorder %s113, %s114
      %p125 = scmp.eq.s32.totalorder %s22, 0
      %p126 = por %p124, %p125
      %p127 = scmp.ne.s32.totalorder %s113, %s114
      %p128 = scmp.eq.s32.totalorder %s23, 1
      %p129 = por %p127, %p128
      %p131 = scmp.ne.s32.totalorder %s114, %s130
      %p132 = scmp.eq.s32.totalorder %s23, 0
      %p133 = por %p131, %p132
      %p134 = scmp.le.s32.totalorder 1, %s17
      %p135 = scmp.lt.s32.totalorder %s17, 3
      %p136 = pnand %p134, %p135
      %p137 = pneg %p136
      // Predicated region
      $region9: #{tpu_custom_call.1} parent=5 // pred_check
        _
      $region10: #{tpu_custom_call.1} parent=5 // pred_check_branch
        %139 = sbr.rel (%p136) target = $region12
      $region11: #{tpu_custom_call.1} parent=5 // pred_region
        %s140 = ssub.s32 %s17, 1
      $region12: #{tpu_custom_call.1} parent=5 // pred_fallthru
        _
      %p141 = scmp.lt.s32.totalorder %s17, 2
      // Predicated region
      $region13: #{tpu_custom_call.1} parent=5 // pred_check
        %p142 = pneg %p141
      $region14: #{tpu_custom_call.1} parent=5 // pred_check_branch
        %144 = sbr.rel (%p142) target = $region16
      $region15: #{tpu_custom_call.1} parent=5 // pred_region
        // Predicated region
        $region17: #{tpu_custom_call.1} parent=15 // pred_check
          %p145 = pneg %p60
        $region18: #{tpu_custom_call.1} parent=15 // pred_check_branch
          %147 = sbr.rel (%p145) target = $region20
        $region19: #{tpu_custom_call.1} parent=15 // pred_region
          %s148 = sand.u32 %s50, 1
          %s149 = scalar_lea.sflag [#allocation3], %s148
          %s150 = sand.u32 %s50, 1
          %s151 = smul.addr %s150, 128
          %s152 = scalar_lea.vmem [#allocation2], %s151
          %s153 = smul.u32 8, %s25
          %s154 = smul.u32 2, %s26
          %s156 = ssub.s32 2048, 2048
          %157 = vsyncadd %s149, %s156
          %s158 = smul.addr %s153, 2
          %s159 = sadd.s32 %s154, %s158
          %s160 = smul.addr %s24, 32
          %s161 = sadd.s32 %s159, %s160
          %s162 = smul.addr %s161, 128
          %s163 = scalar_lea.hbm %s0, %s162
          %s164 = sshll.u32 %s152, 4
          %s165 = int_to_ptr.vmem [resolvable:$true] %s164
          %170 = dma.hbm_to_vmem [thread:$0]  %s163, 2048, %s165, %s149, 256, 256, 16
        $region20: #{tpu_custom_call.1} parent=15 // pred_fallthru
          _
        // Predicated region
        $region21: #{tpu_custom_call.1} parent=15 // pred_check
          %p171 = pneg %p90
        $region22: #{tpu_custom_call.1} parent=15 // pred_check_branch
          %173 = sbr.rel (%p171) target = $region24
        $region23: #{tpu_custom_call.1} parent=15 // pred_region
          %s174 = sand.u32 %s80, 1
          %s175 = scalar_lea.sflag [#allocation6], %s174
          %s176 = sand.u32 %s80, 1
          %s177 = smul.addr %s176, 128
          %s178 = scalar_lea.vmem [#allocation5], %s177
          %s179 = smul.u32 8, %s25
          %s180 = smul.u32 2, %s26
          %s182 = ssub.s32 2048, 2048
          %183 = vsyncadd %s175, %s182
          %s184 = smul.addr %s179, 2
          %s185 = sadd.s32 %s180, %s184
          %s186 = sadd.s32 %s185, 16
          %s187 = smul.addr %s24, 32
          %s188 = sadd.s32 %s186, %s187
          %s189 = smul.addr %s188, 128
          %s190 = scalar_lea.hbm %s1, %s189
          %s191 = sshll.u32 %s178, 4
          %s192 = int_to_ptr.vmem [resolvable:$true] %s191
          %197 = dma.hbm_to_vmem [thread:$0]  %s190, 2048, %s192, %s175, 256, 256, 16
        $region24: #{tpu_custom_call.1} parent=15 // pred_fallthru
          _
      $region16: #{tpu_custom_call.1} parent=5 // pred_fallthru
        _
      %p198 = scmp.le.s32.totalorder 1, %s17
      %p199 = scmp.lt.s32.totalorder %s17, 3
      %p200 = pnand %p198, %p199
      %p201 = pneg %p200
      // Predicated region
      $region25: #{tpu_custom_call.1} parent=5 // pred_check
        _
      $region26: #{tpu_custom_call.1} parent=5 // pred_check_branch
        %203 = sbr.rel (%p200) target = $region28
      $region27: #{tpu_custom_call.1} parent=5 // pred_region
        %s204 = ssub.s32 %s17, 1
        %s205 = sand.u32 %s53, 1
        %s206 = scalar_lea.sflag [#allocation3], %s205
        %s207 = sand.u32 %s53, 1
        %s208 = smul.addr %s207, 128
        %s209 = scalar_lea.vmem [#allocation2], %s208
        // Predicated region
        $region29: #{tpu_custom_call.1} parent=27 // pred_check
          %p210 = pneg %p66
        $region30: #{tpu_custom_call.1} parent=27 // pred_check_branch
          %212 = sbr.rel (%p210) target = $region32
        $region31: #{tpu_custom_call.1} parent=27 // pred_region
          %213 = dma.done %s206, 2048
        $region32: #{tpu_custom_call.1} parent=27 // pred_fallthru
          _
        %s214 = sand.u32 %s83, 1
        %s215 = scalar_lea.sflag [#allocation6], %s214
        %s216 = sand.u32 %s83, 1
        %s217 = smul.addr %s216, 128
        %s218 = scalar_lea.vmem [#allocation5], %s217
        // Predicated region
        $region33: #{tpu_custom_call.1} parent=27 // pred_check
          %p219 = pneg %p96
        $region34: #{tpu_custom_call.1} parent=27 // pred_check_branch
          %221 = sbr.rel (%p219) target = $region36
        $region35: #{tpu_custom_call.1} parent=27 // pred_region
          %222 = dma.done %s215, 2048
        $region36: #{tpu_custom_call.1} parent=27 // pred_fallthru
          _
        %s223 = sand.u32 %s53, 1
        %s224 = scalar_lea.sflag [#allocation3], %s223
        %s225 = sand.u32 %s53, 1
        %s226 = smul.addr %s225, 128
        %s227 = scalar_lea.vmem [#allocation2], %s226
        %p228 = pneg %p66
        %p229 = pneg %p63
        %s230 = sand.u32 %s83, 1
        %s231 = scalar_lea.sflag [#allocation6], %s230
        %s232 = sand.u32 %s83, 1
        %s233 = smul.addr %s232, 128
        %s234 = scalar_lea.vmem [#allocation5], %s233
        %p235 = pneg %p96
        %p236 = pneg %p93
        %p237 = pneg %p126
        %p238 = pneg %p123
        %s239 = sand.u32 %s113, 1
        %s240 = scalar_lea.sflag [#allocation4], %s239
        %s241 = sand.u32 %s113, 1
        %s242 = smul.addr %s241, 128
        %s243 = scalar_lea.vmem [#allocation7], %s242
        %s244 = smul.u32 8, %s28
        %s245 = smul.u32 2, %s29
        %s246 = smul.u32 8, %s28
        %s247 = smul.u32 2, %s29
        %s248 = smul.u32 8, %s28
        %s249 = smul.u32 2, %s29
        %v250 = vld [vmem:[%s209] sm:$0xff]
        %v251 = vld [vmem:[%s209 + $0x8] sm:$0xff]
        %v252 = vld [vmem:[%s209 + $0x10] sm:$0xff]
        %v253 = vld [vmem:[%s209 + $0x18] sm:$0xff]
        %v254 = vld [vmem:[%s209 + $0x20] sm:$0xff]
        %v255 = vld [vmem:[%s209 + $0x28] sm:$0xff]
        %v256 = vld [vmem:[%s209 + $0x30] sm:$0xff]
        %v257 = vld [vmem:[%s209 + $0x38] sm:$0xff]
        %v258 = vld [vmem:[%s209 + $0x40] sm:$0xff]
        %v259 = vld [vmem:[%s209 + $0x48] sm:$0xff]
        %v260 = vld [vmem:[%s209 + $0x50] sm:$0xff]
        %v261 = vld [vmem:[%s209 + $0x58] sm:$0xff]
        %v262 = vld [vmem:[%s209 + $0x60] sm:$0xff]
        %v263 = vld [vmem:[%s209 + $0x68] sm:$0xff]
        %v264 = vld [vmem:[%s209 + $0x70] sm:$0xff]
        %v265 = vld [vmem:[%s209 + $0x78] sm:$0xff]
        %v266 = vld [vmem:[%s218] sm:$0xff]
        %v267 = vld [vmem:[%s218 + $0x8] sm:$0xff]
        %v268 = vld [vmem:[%s218 + $0x10] sm:$0xff]
        %v269 = vld [vmem:[%s218 + $0x18] sm:$0xff]
        %v270 = vld [vmem:[%s218 + $0x20] sm:$0xff]
        %v271 = vld [vmem:[%s218 + $0x28] sm:$0xff]
        %v272 = vld [vmem:[%s218 + $0x30] sm:$0xff]
        %v273 = vld [vmem:[%s218 + $0x38] sm:$0xff]
        %v274 = vld [vmem:[%s218 + $0x40] sm:$0xff]
        %v275 = vld [vmem:[%s218 + $0x48] sm:$0xff]
        %v276 = vld [vmem:[%s218 + $0x50] sm:$0xff]
        %v277 = vld [vmem:[%s218 + $0x58] sm:$0xff]
        %v278 = vld [vmem:[%s218 + $0x60] sm:$0xff]
        %v279 = vld [vmem:[%s218 + $0x68] sm:$0xff]
        %v280 = vld [vmem:[%s218 + $0x70] sm:$0xff]
        %v281 = vld [vmem:[%s218 + $0x78] sm:$0xff]
        %v282 = vxor.u32 %v266, 2147483648
        %v283 = vxor.u32 %v267, 2147483648
        %v284 = vxor.u32 %v268, 2147483648
        %v285 = vxor.u32 %v269, 2147483648
        %v286 = vxor.u32 %v270, 2147483648
        %v287 = vxor.u32 %v271, 2147483648
        %v288 = vxor.u32 %v272, 2147483648
        %v289 = vxor.u32 %v273, 2147483648
        %v290 = vxor.u32 %v274, 2147483648
        %v291 = vxor.u32 %v275, 2147483648
        %v292 = vxor.u32 %v276, 2147483648
        %v293 = vxor.u32 %v277, 2147483648
        %v294 = vxor.u32 %v278, 2147483648
        %v295 = vxor.u32 %v279, 2147483648
        %v296 = vxor.u32 %v280, 2147483648
        %v297 = vxor.u32 %v281, 2147483648
        %v298 = vmul.f32 %v282, 1.442695
        %v299 = vpow.pop %v298
        %v300 = vmul.f32 %v283, 1.442695
        %v301 = vpow.pop %v300
        %v302 = vmul.f32 %v284, 1.442695
        %v303 = vpow.pop %v302
        %v304 = vmul.f32 %v285, 1.442695
        %v305 = vpow.pop %v304
        %v306 = vmul.f32 %v286, 1.442695
        %v307 = vpow.pop %v306
        %v308 = vmul.f32 %v287, 1.442695
        %v309 = vpow.pop %v308
        %v310 = vmul.f32 %v288, 1.442695
        %v311 = vpow.pop %v310
        %v312 = vmul.f32 %v289, 1.442695
        %v313 = vpow.pop %v312
        %v314 = vmul.f32 %v290, 1.442695
        %v315 = vpow.pop %v314
        %v316 = vmul.f32 %v291, 1.442695
        %v317 = vpow.pop %v316
        %v318 = vmul.f32 %v292, 1.442695
        %v319 = vpow.pop %v318
        %v320 = vmul.f32 %v293, 1.442695
        %v321 = vpow.pop %v320
        %v322 = vmul.f32 %v294, 1.442695
        %v323 = vpow.pop %v322
        %v324 = vmul.f32 %v295, 1.442695
        %v325 = vpow.pop %v324
        %v326 = vmul.f32 %v296, 1.442695
        %v327 = vpow.pop %v326
        %v328 = vmul.f32 %v297, 1.442695
        %v329 = vpow.pop %v328
        %v330 = vadd.f32 %v299, 1.0
        %v331 = vadd.f32 %v301, 1.0
        %v332 = vadd.f32 %v303, 1.0
        %v333 = vadd.f32 %v305, 1.0
        %v334 = vadd.f32 %v307, 1.0
        %v335 = vadd.f32 %v309, 1.0
        %v336 = vadd.f32 %v311, 1.0
        %v337 = vadd.f32 %v313, 1.0
        %v338 = vadd.f32 %v315, 1.0
        %v339 = vadd.f32 %v317, 1.0
        %v340 = vadd.f32 %v319, 1.0
        %v341 = vadd.f32 %v321, 1.0
        %v342 = vadd.f32 %v323, 1.0
        %v343 = vadd.f32 %v325, 1.0
        %v344 = vadd.f32 %v327, 1.0
        %v345 = vadd.f32 %v329, 1.0
        %v346 = vrcp.pop %v330
        %v347 = vmul.f32 1.0, %v346
        %v348 = vrcp.pop %v331
        %v349 = vmul.f32 1.0, %v348
        %v350 = vrcp.pop %v332
        %v351 = vmul.f32 1.0, %v350
        %v352 = vrcp.pop %v333
        %v353 = vmul.f32 1.0, %v352
        %v354 = vrcp.pop %v334
        %v355 = vmul.f32 1.0, %v354
        %v356 = vrcp.pop %v335
        %v357 = vmul.f32 1.0, %v356
        %v358 = vrcp.pop %v336
        %v359 = vmul.f32 1.0, %v358
        %v360 = vrcp.pop %v337
        %v361 = vmul.f32 1.0, %v360
        %v362 = vrcp.pop %v338
        %v363 = vmul.f32 1.0, %v362
        %v364 = vrcp.pop %v339
        %v365 = vmul.f32 1.0, %v364
        %v366 = vrcp.pop %v340
        %v367 = vmul.f32 1.0, %v366
        %v368 = vrcp.pop %v341
        %v369 = vmul.f32 1.0, %v368
        %v370 = vrcp.pop %v342
        %v371 = vmul.f32 1.0, %v370
        %v372 = vrcp.pop %v343
        %v373 = vmul.f32 1.0, %v372
        %v374 = vrcp.pop %v344
        %v375 = vmul.f32 1.0, %v374
        %v376 = vrcp.pop %v345
        %v377 = vmul.f32 1.0, %v376
        %v378 = vmul.f32 %v250, %v347
        %v379 = vmul.f32 %v251, %v349
        %v380 = vmul.f32 %v252, %v351
        %v381 = vmul.f32 %v253, %v353
        %v382 = vmul.f32 %v254, %v355
        %v383 = vmul.f32 %v255, %v357
        %v384 = vmul.f32 %v256, %v359
        %v385 = vmul.f32 %v257, %v361
        %v386 = vmul.f32 %v258, %v363
        %v387 = vmul.f32 %v259, %v365
        %v388 = vmul.f32 %v260, %v367
        %v389 = vmul.f32 %v261, %v369
        %v390 = vmul.f32 %v262, %v371
        %v391 = vmul.f32 %v263, %v373
        %v392 = vmul.f32 %v264, %v375
        %v393 = vmul.f32 %v265, %v377
        %394 = vst [vmem:[%s243] sm:$0xff] %v378
        %395 = vst [vmem:[%s243 + $0x8] sm:$0xff] %v379
        %396 = vst [vmem:[%s243 + $0x10] sm:$0xff] %v380
        %397 = vst [vmem:[%s243 + $0x18] sm:$0xff] %v381
        %398 = vst [vmem:[%s243 + $0x20] sm:$0xff] %v382
        %399 = vst [vmem:[%s243 + $0x28] sm:$0xff] %v383
        %400 = vst [vmem:[%s243 + $0x30] sm:$0xff] %v384
        %401 = vst [vmem:[%s243 + $0x38] sm:$0xff] %v385
        %402 = vst [vmem:[%s243 + $0x40] sm:$0xff] %v386
        %403 = vst [vmem:[%s243 + $0x48] sm:$0xff] %v387
        %404 = vst [vmem:[%s243 + $0x50] sm:$0xff] %v388
        %405 = vst [vmem:[%s243 + $0x58] sm:$0xff] %v389
        %406 = vst [vmem:[%s243 + $0x60] sm:$0xff] %v390
        %407 = vst [vmem:[%s243 + $0x68] sm:$0xff] %v391
        %408 = vst [vmem:[%s243 + $0x70] sm:$0xff] %v392
        %409 = vst [vmem:[%s243 + $0x78] sm:$0xff] %v393
        %s410 = sand.u32 %s113, 1
        %s411 = scalar_lea.sflag [#allocation4], %s410
        %s412 = sand.u32 %s113, 1
        %s413 = smul.addr %s412, 128
        %s414 = scalar_lea.vmem [#allocation7], %s413
        // Predicated region
        $region37: #{tpu_custom_call.1} parent=27 // pred_check
          %p415 = pneg %p123
        $region38: #{tpu_custom_call.1} parent=27 // pred_check_branch
          %417 = sbr.rel (%p415) target = $region40
        $region39: #{tpu_custom_call.1} parent=27 // pred_region
          %s418 = smul.u32 8, %s28
          %s419 = smul.u32 2, %s29
          %s421 = ssub.s32 2048, 2048
          %422 = vsyncadd %s411, %s421
          %s423 = smul.addr %s418, 2
          %s424 = sadd.s32 %s419, %s423
          %s425 = smul.addr %s27, 16
          %s426 = sadd.s32 %s424, %s425
          %s427 = smul.addr %s426, 128
          %s428 = scalar_lea.hbm %s2, %s427
          %s429 = sshll.u32 %s414, 4
          %s430 = int_to_ptr.vmem [resolvable:$true] %s429
          %435 = dma.vmem_to_hbm [thread:$0]  %s430, 2048, %s428, %s411, 256, 256, 16
        $region40: #{tpu_custom_call.1} parent=27 // pred_fallthru
          _
      $region28: #{tpu_custom_call.1} parent=5 // pred_fallthru
        _
      %p436 = scmp.le.s32.totalorder 2, %s17
      // Predicated region
      $region41: #{tpu_custom_call.1} parent=5 // pred_check
        %p437 = pneg %p436
      $region42: #{tpu_custom_call.1} parent=5 // pred_check_branch
        %439 = sbr.rel (%p437) target = $region44
      $region43: #{tpu_custom_call.1} parent=5 // pred_region
        %s440 = ssub.s32 %s17, 2
        // Predicated region
        $region45: #{tpu_custom_call.1} parent=43 // pred_check
          %p441 = pneg %p129
        $region46: #{tpu_custom_call.1} parent=43 // pred_check_branch
          %443 = sbr.rel (%p441) target = $region48
        $region47: #{tpu_custom_call.1} parent=43 // pred_region
          %s444 = sand.u32 %s114, 1
          %s445 = scalar_lea.sflag [#allocation4], %s444
          %s446 = sand.u32 %s114, 1
          %s447 = smul.addr %s446, 128
          %s448 = scalar_lea.vmem [#allocation7], %s447
          %449 = dma.done %s445, 2048
        $region48: #{tpu_custom_call.1} parent=43 // pred_fallthru
          _
      $region44: #{tpu_custom_call.1} parent=5 // pred_fallthru
        _
    $region6: #{tpu_custom_call.1} parent=1 // loop_footer
      %s21 = sadd.s32 1, %s17
    $region7: #{tpu_custom_call.1} parent=1 // loop_footer_branch
      %16 = sbr.rel target = $region3
    $region8: #{tpu_custom_call.1} parent=1 // loop_exit
      _
    %450 = vsyncpa [#allocation3], 1
    %s451 = scalar_lea.sflag [#allocation3], 1
    %452 = vsyncpa %s451, 1
    %453 = vsyncpa [#allocation6], 1
    %s454 = scalar_lea.sflag [#allocation6], 1
    %455 = vsyncpa %s454, 1
    %456 = vsyncpa [#allocation4], 1
    %s457 = scalar_lea.sflag [#allocation4], 1
    %458 = vsyncpa %s457, 1

</llo_original>
